<compile_context>
chip_gen: v6e
topology: v6e:2x2x1
jax: 0.10.0
libtpu: 0.0.40
codegen_flags: <defaults>
</compile_context>

<pallas_src>
import functools

import jax
import jax.numpy as jnp
from jax.experimental import pallas as pl
from jax.experimental.pallas import tpu as pltpu


def _round_up(x, m):
    return (x + m - 1) // m * m


def _ce2d_kernel(x_ref, t_ref, w_ref, nll_ref, wsum_ref):
    """One class-major pixel tile.

    x_ref   : (C, T) logits  -- classes on sublanes, pixels lane-dense
    t_ref   : (1, T) int32 targets (-1 marks padding -> contributes 0)
    w_ref   : (C, 1) class weights (resident)
    nll_ref : (1, T) per-lane partials of w[t] * (logsumexp(x) - x[t])  (accumulated over j)
    wsum_ref: (1, T) per-lane partials of w[t]
    """
    j = pl.program_id(1)

    @pl.when(j == 0)
    def _():
        nll_ref[...] = jnp.zeros_like(nll_ref)
        wsum_ref[...] = jnp.zeros_like(wsum_ref)

    x = x_ref[...].astype(jnp.float32)          # (C, T)
    t = t_ref[...]                              # (1, T) int32
    w = w_ref[...].astype(jnp.float32)          # (C, 1)

    # log-sum-exp over classes (sublane axis); per-pixel results stay lane-dense.
    m = jnp.max(x, axis=0, keepdims=True)                               # (1, T)
    lse = jnp.log(jnp.sum(jnp.exp(x - m), axis=0, keepdims=True)) + m   # (1, T)

    # one-hot gather of the target logit and its class weight (single one-hot, two
    # sublane reductions; t = -1 or out-of-range -> all-zero column -> weight 0).
    cls = jax.lax.broadcasted_iota(jnp.int32, x.shape, 0)               # (C, T)
    onehot = (cls == t).astype(jnp.float32)                             # (C, T)
    tgt_logit = jnp.sum(x * onehot, axis=0, keepdims=True)              # (1, T)
    w_pix = jnp.sum(onehot * w, axis=0, keepdims=True)                  # (1, T)

    nll_ref[...] += w_pix * (lse - tgt_logit)
    wsum_ref[...] += w_pix


@functools.partial(jax.jit, static_argnames=("tile_hw",))
def cross_entropy_loss_2d(outputs, targets, weight=None, *, tile_hw=2048):
    """outputs: (N, C, H, W) float; targets: (N, H, W) int; weight: (C,) float or None."""
    N, C, H, W = outputs.shape
    HW = H * W
    itemsize = jnp.dtype(outputs.dtype).itemsize

    # Pixel-tile selection: as big as possible (amortize ~0.35us/step overhead), but
    # capped by (a) the padded spatial extent and (b) ~8 MiB per logits tile so that
    # double-buffering stays well inside v7x's 64 MiB VMEM even for large C.
    vmem_cap = max(128, ((8 * 1024 * 1024) // max(C * itemsize, 1)) // 128 * 128)
    tile = max(128, min(tile_hw, _round_up(HW, 128), vmem_cap))

    HW_pad = _round_up(HW, tile)
    num_tiles = HW_pad // tile

    # Class-major layout straight from NCHW: free reshape, no transpose HBM pass.
    logits = outputs.reshape(N, C, HW)
    tgts = targets.reshape(N, 1, HW).astype(jnp.int32)
    if HW_pad != HW:
        logits = jnp.pad(logits, ((0, 0), (0, 0), (0, HW_pad - HW)))
        tgts = jnp.pad(tgts, ((0, 0), (0, 0), (0, HW_pad - HW)), constant_values=-1)

    if weight is None:
        weight = jnp.ones((C,), jnp.float32)
    w_col = weight.astype(jnp.float32).reshape(C, 1)

    cost = pl.CostEstimate(
        flops=8 * N * C * HW_pad,
        transcendentals=(C + 1) * N * HW_pad,
        bytes_accessed=N * C * HW_pad * itemsize + N * HW_pad * 4 + 2 * N * tile * 4,
    )

    nll_p, wsum_p = pl.pallas_call(
        _ce2d_kernel,
        out_shape=(
            jax.ShapeDtypeStruct((N, 1, tile), jnp.float32),
            jax.ShapeDtypeStruct((N, 1, tile), jnp.float32),
        ),
        grid_spec=pltpu.PrefetchScalarGridSpec(
            num_scalar_prefetch=0,
            grid=(N, num_tiles),
            in_specs=[
                pl.BlockSpec((None, C, tile), lambda n, j: (n, 0, j)),   # logits tile
                pl.BlockSpec((None, 1, tile), lambda n, j: (n, 0, j)),   # target tile
                pl.BlockSpec((C, 1), lambda n, j: (0, 0)),               # class weights
            ],
            out_specs=(
                pl.BlockSpec((None, 1, tile), lambda n, j: (n, 0, 0)),   # nll partials
                pl.BlockSpec((None, 1, tile), lambda n, j: (n, 0, 0)),   # wsum partials
            ),
        ),
        compiler_params=pltpu.CompilerParams(
            dimension_semantics=("parallel", "arbitrary"),
            vmem_limit_bytes=32 * 1024 * 1024,
        ),
        cost_estimate=cost,
    )(logits, tgts, w_col)

    # Final (tiny) lane + batch reduce and 'mean' divide in XLA.
    # If every target is out-of-range/padding, wsum == 0 and this returns NaN,
    # matching PyTorch's 0/0 behavior for an all-ignored batch.
    return jnp.sum(nll_p) / jnp.sum(wsum_p)


def _reference(outputs, targets, weight):
    # plain-JAX reference of torch.nn.CrossEntropyLoss(weight)(outputs, targets)
    N, C, H, W = outputs.shape
    x = jnp.transpose(outputs, (0, 2, 3, 1)).reshape(-1, C).astype(jnp.float32)
    t = targets.reshape(-1)
    logp = jax.nn.log_softmax(x, axis=-1)
    nll = -jnp.take_along_axis(logp, t[:, None], axis=-1)[:, 0]
    w = weight[t]
    return jnp.sum(w * nll) / jnp.sum(w)


if __name__ == "__main__":
    key = jax.random.PRNGKey(0)
    k1, k2 = jax.random.split(key)

    N, C, H, W = 2, 4, 16, 16
    outputs = jax.random.normal(k1, (N, C, H, W), dtype=jnp.float32)
    targets = jax.random.randint(k2, (N, H, W), 0, C, dtype=jnp.int32)
    # deterministic class-imbalance weights (1D vector of length C)
    weight = jnp.array([0.5, 1.0, 1.5, 2.0], dtype=jnp.float32)

    loss = cross_entropy_loss_2d(outputs, targets, weight)
    loss = jax.block_until_ready(loss)

    ref = _reference(outputs, targets, weight)
    assert jnp.allclose(loss, ref, atol=1e-5, rtol=1e-5), (loss, ref)

    print("KERNEL_OK")
</pallas_src>

<mosaic_0001>
module attributes {stable_mosaic.version = 11 : i64} {
  func.func @_ce2d_kernel(%arg0: i32, %arg1: i32, %arg2: memref<1x4x256xf32, #tpu.memory_space<vmem>>, %arg3: memref<1x1x256xi32, #tpu.memory_space<vmem>>, %arg4: memref<4x1xf32, #tpu.memory_space<vmem>>, %arg5: memref<1x1x256xf32, #tpu.memory_space<vmem>>, %arg6: memref<1x1x256xf32, #tpu.memory_space<vmem>>) attributes {dimension_semantics = [#tpu.dimension_semantics<parallel>, #tpu.dimension_semantics<arbitrary>], iteration_bounds = array<i64: 2, 1>, scalar_prefetch = 0 : i64, scratch_operands = 0 : i64, tpu.core_type = #tpu.core_type<tc>, window_params = [{transform_indices = @transform_0, window_bounds = array<i64: 1, 4, 256>}, {transform_indices = @transform_1, window_bounds = array<i64: 1, 1, 256>}, {pipeline_mode = #tpu.pipeline_mode<synchronous>, transform_indices = @transform_2, window_bounds = array<i64: 4, 1>}, {transform_indices = @transform_3, window_bounds = array<i64: 1, 1, 256>}, {transform_indices = @transform_4, window_bounds = array<i64: 1, 1, 256>}]} {
    %c0_i32 = arith.constant 0 : i32
    %0 = arith.cmpi eq, %arg1, %c0_i32 : i32
    %1 = arith.extui %0 : i1 to i32
    %c0_i32_0 = arith.constant 0 : i32
    %2 = arith.cmpi ne, %1, %c0_i32_0 : i32
    scf.if %2 {
      %cst_23 = arith.constant 0.000000e+00 : f32
      %43 = vector.broadcast %cst_23 : f32 to vector<1x256xf32>
      %c0_24 = arith.constant 0 : index
      %c0_25 = arith.constant 0 : index
      %c0_26 = arith.constant 0 : index
      %44 = vector.load %arg5[%c0_24, %c0_25, %c0_26] : memref<1x1x256xf32, #tpu.memory_space<vmem>>, vector<1x1x256xf32>
      %45 = vector.shape_cast %44 : vector<1x1x256xf32> to vector<1x256xf32>
      %46 = vector.shape_cast %43 : vector<1x256xf32> to vector<1x1x256xf32>
      tpu.vector_store %arg5[%c0_24, %c0_25, %c0_26], %46 {strides = array<i32>} : memref<1x1x256xf32, #tpu.memory_space<vmem>>, vector<1x1x256xf32>,
      %cst_27 = arith.constant 0.000000e+00 : f32
      %47 = vector.broadcast %cst_27 : f32 to vector<1x256xf32>
      %c0_28 = arith.constant 0 : index
      %c0_29 = arith.constant 0 : index
      %c0_30 = arith.constant 0 : index
      %48 = vector.load %arg6[%c0_28, %c0_29, %c0_30] : memref<1x1x256xf32, #tpu.memory_space<vmem>>, vector<1x1x256xf32>
      %49 = vector.shape_cast %48 : vector<1x1x256xf32> to vector<1x256xf32>
      %50 = vector.shape_cast %47 : vector<1x256xf32> to vector<1x1x256xf32>
      tpu.vector_store %arg6[%c0_28, %c0_29, %c0_30], %50 {strides = array<i32>} : memref<1x1x256xf32, #tpu.memory_space<vmem>>, vector<1x1x256xf32>,
    } else {
    }
    %c0 = arith.constant 0 : index
    %c0_1 = arith.constant 0 : index
    %c0_2 = arith.constant 0 : index
    %3 = vector.load %arg2[%c0, %c0_1, %c0_2] : memref<1x4x256xf32, #tpu.memory_space<vmem>>, vector<1x4x256xf32>
    %4 = vector.shape_cast %3 : vector<1x4x256xf32> to vector<4x256xf32>
    %c0_3 = arith.constant 0 : index
    %c0_4 = arith.constant 0 : index
    %c0_5 = arith.constant 0 : index
    %5 = vector.load %arg3[%c0_3, %c0_4, %c0_5] : memref<1x1x256xi32, #tpu.memory_space<vmem>>, vector<1x1x256xi32>
    %6 = vector.shape_cast %5 : vector<1x1x256xi32> to vector<1x256xi32>
    %c0_6 = arith.constant 0 : index
    %c0_7 = arith.constant 0 : index
    %7 = vector.load %arg4[%c0_6, %c0_7] : memref<4x1xf32, #tpu.memory_space<vmem>>, vector<4x1xf32>
    %cst = arith.constant dense<0xFF800000> : vector<256xf32>
    %8 = vector.multi_reduction <maximumf>, %4, %cst [0] : vector<4x256xf32> to vector<256xf32>
    %9 = vector.shape_cast %8 : vector<256xf32> to vector<1x256xf32>
    %10 = vector.broadcast %9 : vector<1x256xf32> to vector<4x256xf32>
    %11 = arith.subf %4, %10 : vector<4x256xf32>
    %12 = math.exp %11 : vector<4x256xf32>
    %cst_8 = arith.constant dense<0.000000e+00> : vector<256xf32>
    %13 = vector.multi_reduction <add>, %12, %cst_8 [0] : vector<4x256xf32> to vector<256xf32>
    %14 = vector.shape_cast %13 : vector<256xf32> to vector<1x256xf32>
    %15 = math.log %14 : vector<1x256xf32>
    %16 = arith.addf %15, %9 : vector<1x256xf32>
    %17 = tpu.iota {dimensions = array<i32: 0>} : vector<4x256xi32>
    %18 = vector.broadcast %6 : vector<1x256xi32> to vector<4x256xi32>
    %19 = arith.cmpi eq, %17, %18 : vector<4x256xi32>
    %20 = arith.extui %19 : vector<4x256xi1> to vector<4x256xi32>
    %21 = arith.sitofp %20 : vector<4x256xi32> to vector<4x256xf32>
    %22 = arith.mulf %4, %21 : vector<4x256xf32>
    %cst_9 = arith.constant dense<0.000000e+00> : vector<256xf32>
    %23 = vector.multi_reduction <add>, %22, %cst_9 [0] : vector<4x256xf32> to vector<256xf32>
    %24 = vector.shape_cast %23 : vector<256xf32> to vector<1x256xf32>
    %25 = vector.broadcast %7 : vector<4x1xf32> to vector<4x256xf32>
    %26 = arith.mulf %21, %25 : vector<4x256xf32>
    %cst_10 = arith.constant dense<0.000000e+00> : vector<256xf32>
    %27 = vector.multi_reduction <add>, %26, %cst_10 [0] : vector<4x256xf32> to vector<256xf32>
    %28 = vector.shape_cast %27 : vector<256xf32> to vector<1x256xf32>
    %c0_11 = arith.constant 0 : index
    %c0_12 = arith.constant 0 : index
    %c0_13 = arith.constant 0 : index
    %29 = vector.load %arg5[%c0_11, %c0_12, %c0_13] : memref<1x1x256xf32, #tpu.memory_space<vmem>>, vector<1x1x256xf32>
    %30 = vector.shape_cast %29 : vector<1x1x256xf32> to vector<1x256xf32>
    %31 = arith.subf %16, %24 : vector<1x256xf32>
    %32 = arith.mulf %28, %31 : vector<1x256xf32>
    %33 = arith.addf %30, %32 : vector<1x256xf32>
    %c0_14 = arith.constant 0 : index
    %c0_15 = arith.constant 0 : index
    %c0_16 = arith.constant 0 : index
    %34 = vector.load %arg5[%c0_14, %c0_15, %c0_16] : memref<1x1x256xf32, #tpu.memory_space<vmem>>, vector<1x1x256xf32>
    %35 = vector.shape_cast %34 : vector<1x1x256xf32> to vector<1x256xf32>
    %36 = vector.shape_cast %33 : vector<1x256xf32> to vector<1x1x256xf32>
    tpu.vector_store %arg5[%c0_14, %c0_15, %c0_16], %36 {strides = array<i32>} : memref<1x1x256xf32, #tpu.memory_space<vmem>>, vector<1x1x256xf32>,
    %c0_17 = arith.constant 0 : index
    %c0_18 = arith.constant 0 : index
    %c0_19 = arith.constant 0 : index
    %37 = vector.load %arg6[%c0_17, %c0_18, %c0_19] : memref<1x1x256xf32, #tpu.memory_space<vmem>>, vector<1x1x256xf32>
    %38 = vector.shape_cast %37 : vector<1x1x256xf32> to vector<1x256xf32>
    %39 = arith.addf %38, %28 : vector<1x256xf32>
    %c0_20 = arith.constant 0 : index
    %c0_21 = arith.constant 0 : index
    %c0_22 = arith.constant 0 : index
    %40 = vector.load %arg6[%c0_20, %c0_21, %c0_22] : memref<1x1x256xf32, #tpu.memory_space<vmem>>, vector<1x1x256xf32>
    %41 = vector.shape_cast %40 : vector<1x1x256xf32> to vector<1x256xf32>
    %42 = vector.shape_cast %39 : vector<1x256xf32> to vector<1x1x256xf32>
    tpu.vector_store %arg6[%c0_20, %c0_21, %c0_22], %42 {strides = array<i32>} : memref<1x1x256xf32, #tpu.memory_space<vmem>>, vector<1x1x256xf32>,
    return
  }
  func.func @transform_0(%arg0: i32, %arg1: i32) -> (i32, i32, i32) {
    %c0_i32 = arith.constant 0 : i32
    %c0_i32_0 = arith.constant 0 : i32
    return %arg0, %c0_i32, %arg1 : i32, i32, i32
  }
  func.func @transform_1(%arg0: i32, %arg1: i32) -> (i32, i32, i32) {
    %c0_i32 = arith.constant 0 : i32
    %c0_i32_0 = arith.constant 0 : i32
    return %arg0, %c0_i32, %arg1 : i32, i32, i32
  }
  func.func @transform_2(%arg0: i32, %arg1: i32) -> (i32, i32) {
    %c0_i32 = arith.constant 0 : i32
    %c0_i32_0 = arith.constant 0 : i32
    %c0_i32_1 = arith.constant 0 : i32
    return %c0_i32, %c0_i32_0 : i32, i32
  }
  func.func @transform_3(%arg0: i32, %arg1: i32) -> (i32, i32, i32) {
    %c0_i32 = arith.constant 0 : i32
    %c0_i32_0 = arith.constant 0 : i32
    %c0_i32_1 = arith.constant 0 : i32
    return %arg0, %c0_i32, %c0_i32_0 : i32, i32, i32
  }
  func.func @transform_4(%arg0: i32, %arg1: i32) -> (i32, i32, i32) {
    %c0_i32 = arith.constant 0 : i32
    %c0_i32_0 = arith.constant 0 : i32
    %c0_i32_1 = arith.constant 0 : i32
    return %arg0, %c0_i32, %c0_i32_0 : i32, i32, i32
  }
}

</mosaic_0001>

<llo_original>
// kernel: cross_entropy_loss_2d.1
$region0: #{cross_entropy_loss_2d.1}
  #allocation0 [shape = 'u32[]', space=smem, size = 0x4, offset = 0x4, fixed_abs, tag = 'smem constant byte address 0x4 - core index']
  #allocation1 [shape = 'u32[144,128]{1,0:T(1,128)}', space=vmem, size = 0x12000, scoped, tag = 'internal scratch']
  %s0 = inlined_call_operand.vmem [shape: f32[2,4,256], index: 0, kind: input, shape index: {}]
  %s1 = inlined_call_operand.vmem [shape: s32[2,1,256], index: 1, kind: input, shape index: {}]
  %s2 = inlined_call_operand.vmem [shape: f32[4,1], index: 2, kind: input, shape index: {}]
  %s3 = inlined_call_operand.vmem [shape: f32[2,1,256], index: 3, kind: output, shape index: {0}]
  %s4 = inlined_call_operand.vmem [shape: f32[2,1,256], index: 4, kind: output, shape index: {1}]
  %5 = xla_tuple %s3, %s4
  %s6 = sld [smem:[#allocation0]]
  $region57: #{cross_entropy_loss_2d.1} parent=0
    _
  %s8 = ssub.s32 1, %s6
  %s9 = scalar_select 0, %s8, %s6
  loop: start=0, step=1, limit=4
  $region2: #{cross_entropy_loss_2d.1} parent=0 // loop_pre_header
    _
  $region3: #{cross_entropy_loss_2d.1} parent=0 // loop_header
    %s11 = sphi 0, %s15
    %p12 = scmp.ge.s32.totalorder %s11, 4
    %s18 = sphi 0, %s30
    %s19 = sphi 0, %s26
    %s20 = sphi 0, %s18
    %s21 = sphi 0, %s19
    %s22 = sphi 0, %s20
    %s23 = sphi 0, %s21
    %s35 = sphi 0, %s37
    %s38 = sphi 0, %s35
    %s39 = sphi 0, %s38
    %s55 = sphi 0, %s39
    %s63 = sphi 0, %s65
    %s66 = sphi 0, %s63
    %s67 = sphi 0, %s66
    %s83 = sphi 0, %s67
    %s87 = sphi 0, %s87
    %s89 = sphi 0, %s87
    %s90 = sphi 0, %s89
    %s104 = sphi 0, %s90
    %s110 = sphi 0, %s112
    %s113 = sphi 0, %s110
    %s114 = sphi 0, %s113
    %s130 = sphi 0, %s114
    %s136 = sphi 0, %s138
    %s139 = sphi 0, %s136
    %s140 = sphi 0, %s139
    %s156 = sphi 0, %s140
  $region4: #{cross_entropy_loss_2d.1} parent=0 // loop_header_branch
    %14 = sbr.rel (%p12) target = $region8
  $region5: #{cross_entropy_loss_2d.1} parent=0 // loop_body
    %s16 = ssub.s32 %s11, 1
    %s17 = ssub.s32 %s11, 2
    %s24 = sadd.s32 1, %s19
    %p25 = scmp.ge.s32.totalorder %s24, 1
    %s26 = scalar_select %p25, 0, %s24
    %s27 = sadd.s32 1, %s18
    %s28 = scalar_select %p25, %s27, %s18
    %p29 = scmp.ge.s32.totalorder %s28, 2
    %s30 = scalar_select %p29, 0, %s28
    %s31 = ssub.s32 %s18, %s30
    %s32 = ssub.s32 %s19, %s26
    %s33 = sor.u32 %s31, %s32
    %p34 = scmp.eq.s32.totalorder %s33, 0
    %s36 = sadd.s32 %s35, 1
    %s37 = scalar_select %p34, %s35, %s36
    %p40 = pneg %p34
    %p41 = scmp.eq.s32.totalorder %s11, 1
    %p42 = por %p40, %p41
    %p43 = scmp.ne.s32.totalorder %s35, %s38
    %p44 = scmp.eq.s32.totalorder %s11, 0
    %p45 = por %p43, %p44
    %p46 = scmp.ne.s32.totalorder %s35, %s38
    %p47 = scmp.eq.s32.totalorder %s16, 1
    %p48 = por %p46, %p47
    %p49 = scmp.ne.s32.totalorder %s38, %s39
    %p50 = scmp.eq.s32.totalorder %s16, 0
    %p51 = por %p49, %p50
    %p52 = scmp.ne.s32.totalorder %s38, %s39
    %p53 = scmp.eq.s32.totalorder %s17, 1
    %p54 = por %p52, %p53
    %p56 = scmp.ne.s32.totalorder %s39, %s55
    %p57 = scmp.eq.s32.totalorder %s17, 0
    %p58 = por %p56, %p57
    %s59 = ssub.s32 %s18, %s30
    %s60 = ssub.s32 %s19, %s26
    %s61 = sor.u32 %s59, %s60
    %p62 = scmp.eq.s32.totalorder %s61, 0
    %s64 = sadd.s32 %s63, 1
    %s65 = scalar_select %p62, %s63, %s64
    %p68 = pneg %p62
    %p69 = scmp.eq.s32.totalorder %s11, 1
    %p70 = por %p68, %p69
    %p71 = scmp.ne.s32.totalorder %s63, %s66
    %p72 = scmp.eq.s32.totalorder %s11, 0
    %p73 = por %p71, %p72
    %p74 = scmp.ne.s32.totalorder %s63, %s66
    %p75 = scmp.eq.s32.totalorder %s16, 1
    %p76 = por %p74, %p75
    %p77 = scmp.ne.s32.totalorder %s66, %s67
    %p78 = scmp.eq.s32.totalorder %s16, 0
    %p79 = por %p77, %p78
    %p80 = scmp.ne.s32.totalorder %s66, %s67
    %p81 = scmp.eq.s32.totalorder %s17, 1
    %p82 = por %p80, %p81
    %p84 = scmp.ne.s32.totalorder %s67, %s83
    %p85 = scmp.eq.s32.totalorder %s17, 0
    %p86 = por %p84, %p85
    %s88 = sadd.s32 %s87, 1
    %p91 = scmp.eq.s32.totalorder %s11, 1
    %p92 = scmp.ne.s32.totalorder %s87, %s89
    %p93 = scmp.eq.s32.totalorder %s11, 0
    %p94 = por %p92, %p93
    %p95 = scmp.ne.s32.totalorder %s87, %s89
    %p96 = scmp.eq.s32.totalorder %s16, 1
    %p97 = por %p95, %p96
    %p98 = scmp.ne.s32.totalorder %s89, %s90
    %p99 = scmp.eq.s32.totalorder %s16, 0
    %p100 = por %p98, %p99
    %p101 = scmp.ne.s32.totalorder %s89, %s90
    %p102 = scmp.eq.s32.totalorder %s17, 1
    %p103 = por %p101, %p102
    %p105 = scmp.ne.s32.totalorder %s90, %s104
    %p106 = scmp.eq.s32.totalorder %s17, 0
    %p107 = por %p105, %p106
    %s108 = ssub.s32 %s18, %s30
    %p109 = scmp.eq.s32.totalorder %s108, 0
    %s111 = sadd.s32 %s110, 1
    %s112 = scalar_select %p109, %s110, %s111
    %p115 = pneg %p109
    %p116 = scmp.eq.s32.totalorder %s11, 1
    %p117 = por %p115, %p116
    %p118 = scmp.ne.s32.totalorder %s110, %s113
    %p119 = scmp.eq.s32.totalorder %s11, 0
    %p120 = por %p118, %p119
    %p121 = scmp.ne.s32.totalorder %s110, %s113
    %p122 = scmp.eq.s32.totalorder %s16, 1
    %p123 = por %p121, %p122
    %p124 = scmp.ne.s32.totalorder %s113, %s114
    %p125 = scmp.eq.s32.totalorder %s16, 0
    %p126 = por %p124, %p125
    %p127 = scmp.ne.s32.totalorder %s113, %s114
    %p128 = scmp.eq.s32.totalorder %s17, 1
    %p129 = por %p127, %p128
    %p131 = scmp.ne.s32.totalorder %s114, %s130
    %p132 = scmp.eq.s32.totalorder %s17, 0
    %p133 = por %p131, %p132
    %s134 = ssub.s32 %s18, %s30
    %p135 = scmp.eq.s32.totalorder %s134, 0
    %s137 = sadd.s32 %s136, 1
    %s138 = scalar_select %p135, %s136, %s137
    %p141 = pneg %p135
    %p142 = scmp.eq.s32.totalorder %s11, 1
    %p143 = por %p141, %p142
    %p144 = scmp.ne.s32.totalorder %s136, %s139
    %p145 = scmp.eq.s32.totalorder %s11, 0
    %p146 = por %p144, %p145
    %p147 = scmp.ne.s32.totalorder %s136, %s139
    %p148 = scmp.eq.s32.totalorder %s16, 1
    %p149 = por %p147, %p148
    %p150 = scmp.ne.s32.totalorder %s139, %s140
    %p151 = scmp.eq.s32.totalorder %s16, 0
    %p152 = por %p150, %p151
    %p153 = scmp.ne.s32.totalorder %s139, %s140
    %p154 = scmp.eq.s32.totalorder %s17, 1
    %p155 = por %p153, %p154
    %p157 = scmp.ne.s32.totalorder %s140, %s156
    %p158 = scmp.eq.s32.totalorder %s17, 0
    %p159 = por %p157, %p158
    %p160 = scmp.le.s32.totalorder 1, %s11
    %p161 = scmp.lt.s32.totalorder %s11, 3
    %p162 = pnand %p160, %p161
    %p163 = pneg %p162
    // Predicated region
    $region9: #{cross_entropy_loss_2d.1} parent=5 // pred_check
      _
    $region10: #{cross_entropy_loss_2d.1} parent=5 // pred_check_branch
      %165 = sbr.rel (%p162) target = $region12
    $region11: #{cross_entropy_loss_2d.1} parent=5 // pred_region
      %s166 = ssub.s32 %s11, 1
      // Predicated region
      $region13: #{cross_entropy_loss_2d.1} parent=11 // pred_check
        %p167 = pneg %p100
      $region14: #{cross_entropy_loss_2d.1} parent=11 // pred_check_branch
        %169 = sbr.rel (%p167) target = $region16
      $region15: #{cross_entropy_loss_2d.1} parent=11 // pred_region
        _
      $region16: #{cross_entropy_loss_2d.1} parent=11 // pred_fallthru
        _
    $region12: #{cross_entropy_loss_2d.1} parent=5 // pred_fallthru
      _
    %p170 = scmp.lt.s32.totalorder %s11, 2
    // Predicated region
    $region17: #{cross_entropy_loss_2d.1} parent=5 // pred_check
      %p171 = pneg %p170
    $region18: #{cross_entropy_loss_2d.1} parent=5 // pred_check_branch
      %173 = sbr.rel (%p171) target = $region20
    $region19: #{cross_entropy_loss_2d.1} parent=5 // pred_region
      // Predicated region
      $region21: #{cross_entropy_loss_2d.1} parent=19 // pred_check
        %p174 = pneg %p45
      $region22: #{cross_entropy_loss_2d.1} parent=19 // pred_check_branch
        %176 = sbr.rel (%p174) target = $region24
      $region23: #{cross_entropy_loss_2d.1} parent=19 // pred_region
        %s177 = smul.u32 2, %s19
        %p178 = scmp.lt.s32.totalorder %s18, 1
        %s179 = scalar_select %p178, %s18, 1
        %p180 = scmp.lt.s32.totalorder %s177, 1
        %s181 = scalar_select %p180, %s177, 1
        %s182 = smul.addr %s179, 2
        %s183 = sadd.s32 %s181, %s182
        %s184 = smul.addr %s183, 4
        %s185 = scalar_lea.vmem %s0, %s184
        %s186 = smul.u32 2, %s19
      $region24: #{cross_entropy_loss_2d.1} parent=19 // pred_fallthru
        _
      // Predicated region
      $region25: #{cross_entropy_loss_2d.1} parent=19 // pred_check
        %p187 = pneg %p73
      $region26: #{cross_entropy_loss_2d.1} parent=19 // pred_check_branch
        %189 = sbr.rel (%p187) target = $region28
      $region27: #{cross_entropy_loss_2d.1} parent=19 // pred_region
        %s190 = smul.u32 2, %s19
        %p191 = scmp.lt.s32.totalorder %s18, 1
        %s192 = scalar_select %p191, %s18, 1
        %p193 = scmp.lt.s32.totalorder %s190, 1
        %s194 = scalar_select %p193, %s190, 1
        %s195 = smul.addr %s192, 2
        %s196 = sadd.s32 %s194, %s195
        %s197 = scalar_lea.vmem %s1, %s196
        %s198 = smul.u32 2, %s19
      $region28: #{cross_entropy_loss_2d.1} parent=19 // pred_fallthru
        _
    $region20: #{cross_entropy_loss_2d.1} parent=5 // pred_fallthru
      _
    %p199 = scmp.le.s32.totalorder 1, %s11
    %p200 = scmp.lt.s32.totalorder %s11, 3
    %p201 = pnand %p199, %p200
    %p202 = pneg %p201
    // Predicated region
    $region29: #{cross_entropy_loss_2d.1} parent=5 // pred_check
      _
    $region30: #{cross_entropy_loss_2d.1} parent=5 // pred_check_branch
      %204 = sbr.rel (%p201) target = $region32
    $region31: #{cross_entropy_loss_2d.1} parent=5 // pred_region
      %s205 = ssub.s32 %s11, 1
      %s206 = smul.u32 2, %s21
      %p207 = scmp.lt.s32.totalorder %s20, 1
      %s208 = scalar_select %p207, %s20, 1
      %p209 = scmp.lt.s32.totalorder %s206, 1
      %s210 = scalar_select %p209, %s206, 1
      %s211 = smul.addr %s208, 2
      %s212 = sadd.s32 %s210, %s211
      %s213 = smul.addr %s212, 4
      %s214 = scalar_lea.vmem %s0, %s213
      %p215 = pneg %p51
      %p216 = pneg %p48
      %s217 = smul.u32 2, %s21
      %p218 = scmp.lt.s32.totalorder %s20, 1
      %s219 = scalar_select %p218, %s20, 1
      %p220 = scmp.lt.s32.totalorder %s217, 1
      %s221 = scalar_select %p220, %s217, 1
      %s222 = smul.addr %s219, 2
      %s223 = sadd.s32 %s221, %s222
      %s224 = scalar_lea.vmem %s1, %s223
      %p225 = pneg %p79
      %p226 = pneg %p76
      %p227 = pneg %p100
      %p228 = pneg %p97
      %p229 = pneg %p126
      %p230 = pneg %p123
      %p231 = scmp.lt.s32.totalorder %s20, 1
      %s232 = scalar_select %p231, %s20, 1
      %s233 = smul.addr %s232, 2
      %s234 = scalar_lea.vmem %s3, %s233
      %p235 = pneg %p152
      %p236 = pneg %p149
      %p237 = scmp.lt.s32.totalorder %s20, 1
      %s238 = scalar_select %p237, %s20, 1
      %s239 = smul.addr %s238, 2
      %s240 = scalar_lea.vmem %s4, %s239
      %s241 = smul.u32 2, %s21
      %p242 = scmp.lt.s32.totalorder %s20, 1
      %s243 = scalar_select %p242, %s20, 1
      %p244 = scmp.lt.s32.totalorder %s241, 1
      %s245 = scalar_select %p244, %s241, 1
      %s246 = smul.addr %s243, 2
      %s247 = sadd.s32 %s245, %s246
      %s248 = smul.addr %s247, 4
      %s249 = scalar_lea.vmem %s0, %s248
      %s250 = smul.u32 2, %s21
      %s251 = smul.u32 2, %s21
      %p252 = scmp.lt.s32.totalorder %s20, 1
      %s253 = scalar_select %p252, %s20, 1
      %p254 = scmp.lt.s32.totalorder %s251, 1
      %s255 = scalar_select %p254, %s251, 1
      %s256 = smul.addr %s253, 2
      %s257 = sadd.s32 %s255, %s256
      %s258 = scalar_lea.vmem %s1, %s257
      %s259 = smul.u32 2, %s21
      %p260 = scmp.lt.s32.totalorder %s20, 1
      %s261 = scalar_select %p260, %s20, 1
      %s262 = smul.addr %s261, 2
      %s263 = scalar_lea.vmem %s3, %s262
      %p264 = scmp.lt.s32.totalorder %s20, 1
      %s265 = scalar_select %p264, %s20, 1
      %s266 = smul.addr %s265, 2
      %s267 = scalar_lea.vmem %s4, %s266
      %p268 = scmp.eq.s32.totalorder %s21, 0
      // Predicated region
      $region33: #{cross_entropy_loss_2d.1} parent=31 // pred_check
        %p269 = pneg %p268
      $region34: #{cross_entropy_loss_2d.1} parent=31 // pred_check_branch
        %271 = sbr.rel (%p269) target = $region36
      $region35: #{cross_entropy_loss_2d.1} parent=31 // pred_region
        %v272 = vlaneseq
        %vm273 = vcmp.ge.s32.totalorder %v272, 0
        %vm274 = vcmp.lt.s32.totalorder %v272, 256
        %vm275 = vmand %vm273, %vm274
        %276 = vst.msk [vmem:[%s263] sm:$0x3] %vm275, 0.0
        %277 = vst.msk [vmem:[%s267] sm:$0x3] %vm275, 0.0
      $region36: #{cross_entropy_loss_2d.1} parent=31 // pred_fallthru
        _
      %v278 = vld [vmem:[%s249] sm:$0xff]
      %v279 = vld [vmem:[%s258] sm:$0x3]
      %v280 = vld [vmem:[%s2] sm:$0xf]
      %v282 = vcombine.high %v278, %v278
      %vm284 = vcmask 1043456
      %v285 = vsel %vm284, %v278, -inf
      %v286 = vrot.slane %v285, 4
      %v287 = vmax.f32 %v285, %v286
      %v288 = vrot.slane %v287, 2
      %v289 = vmax.f32 %v287, %v288
      %v290 = vrot.slane %v289, 1
      %v291 = vmax.f32 %v289, %v290
      %v292 = vsel %vm284, %v282, -inf
      %v293 = vrot.slane %v292, 4
      %v294 = vmax.f32 %v292, %v293
      %v295 = vrot.slane %v294, 2
      %v296 = vmax.f32 %v294, %v295
      %v297 = vrot.slane %v296, 1
      %v298 = vmax.f32 %v296, %v297
      %v301 = vcombine.low %v291, %v298
      %v303 = vsub.f32 %v278, %v301
      %v304 = vmul.f32 %v303, 1.442695
      %v305 = vpow.pop %v304
      %v307 = vcombine.high %v305, %v305
      %v309 = vsel %vm284, %v305, 0.0
      %v310 = vrot.slane %v309, 4
      %v311 = vadd.f32 %v309, %v310
      %v312 = vrot.slane %v311, 2
      %v313 = vadd.f32 %v311, %v312
      %v314 = vrot.slane %v313, 1
      %v315 = vadd.f32 %v313, %v314
      %v316 = vsel %vm284, %v307, 0.0
      %v317 = vrot.slane %v316, 4
      %v318 = vadd.f32 %v316, %v317
      %v319 = vrot.slane %v318, 2
      %v320 = vadd.f32 %v318, %v319
      %v321 = vrot.slane %v320, 1
      %v322 = vadd.f32 %v320, %v321
      %v323 = vlog2.pop %v315
      %v324 = vmul.f32 %v323, 0.6931472
      %v325 = vlog2.pop %v322
      %v326 = vmul.f32 %v325, 0.6931472
      %v327 = vadd.f32 %v324, %v291
      %v328 = vadd.f32 %v326, %v298
      %v329 = vlaneseq
      %v330 = vshrl.u32 %v329, 7
      %v331 = vlaneseq
      %v332 = vshrl.u32 %v331, 7
      %v333 = vsub.s32 0, %v332
      %v334 = vrot.slane %v279, %v333
      %v335 = vlaneseq
      %v336 = vshrl.u32 %v335, 7
      %v337 = vsub.s32 1, %v336
      %v338 = vrot.slane %v279, %v337
      %vm339 = vcmp.eq.s32.totalorder %v330, %v334
      %vm340 = vcmp.eq.s32.totalorder %v330, %v338
      %v341 = vsel %vm339, 1, 0
      %v342 = vsel %vm340, 1, 0
      %v343 = vcvt.s32.f32 %v341
      %v344 = vcvt.s32.f32 %v342
      %v347 = vcombine.low %v343, %v344
      %v349 = vmul.f32 %v278, %v347
      %v351 = vcombine.high %v349, %v349
      %v353 = vsel %vm284, %v349, 0.0
      %v354 = vrot.slane %v353, 4
      %v355 = vadd.f32 %v353, %v354
      %v356 = vrot.slane %v355, 2
      %v357 = vadd.f32 %v355, %v356
      %v358 = vrot.slane %v357, 1
      %v359 = vadd.f32 %v357, %v358
      %v360 = vsel %vm284, %v351, 0.0
      %v361 = vrot.slane %v360, 4
      %v362 = vadd.f32 %v360, %v361
      %v363 = vrot.slane %v362, 2
      %v364 = vadd.f32 %v362, %v363
      %v365 = vrot.slane %v364, 1
      %v366 = vadd.f32 %v364, %v365
      %368 = vset.pattern.permute.xlu0 0
      %369 = vperm.xlu0 %368, %v280
      %v370 = vpop.permute.xlu0 %369
      %v372 = vmul.f32 %v343, %v370
      %v373 = vmul.f32 %v344, %v370
      %v374 = vsel %vm284, %v372, 0.0
      %v375 = vrot.slane %v374, 4
      %v376 = vadd.f32 %v374, %v375
      %v377 = vrot.slane %v376, 2
      %v378 = vadd.f32 %v376, %v377
      %v379 = vrot.slane %v378, 1
      %v380 = vadd.f32 %v378, %v379
      %v381 = vsel %vm284, %v373, 0.0
      %v382 = vrot.slane %v381, 4
      %v383 = vadd.f32 %v381, %v382
      %v384 = vrot.slane %v383, 2
      %v385 = vadd.f32 %v383, %v384
      %v386 = vrot.slane %v385, 1
      %v387 = vadd.f32 %v385, %v386
      %v388 = vld [vmem:[%s263] sm:$0x3]
      %v389 = vsub.f32 %v327, %v359
      %v390 = vsub.f32 %v328, %v366
      %v391 = vmul.f32 %v380, %v389
      %v392 = vmul.f32 %v387, %v390
      %v395 = vcombine.low %v391, %v392
      %v397 = vunpack.c.l.s4 1966171168
      %v398 = vunpack.c.0.s8 %v397
      %v399 = vlaneseq
      %v400 = vshrl.u32 %v399, 7
      %v401 = vsub.s32 %v398, %v400
      %v402 = vrot.slane %v395, %v401
      %v404 = vunpack.c.l.s4 1966171168
      %v405 = vunpack.c.0.s8 %v404
      %v406 = vlaneseq
      %v407 = vshrl.u32 %v406, 7
      %v408 = vsub.s32 %v405, %v407
      %v409 = vrot.slane %v402, %v408
      %v411 = vadd.f32 %v388, %v409
      %v412 = vlaneseq
      %vm413 = vcmp.ge.s32.totalorder %v412, 0
      %vm414 = vcmp.lt.s32.totalorder %v412, 256
      %vm415 = vmand %vm413, %vm414
      %416 = vst.msk [vmem:[%s263] sm:$0x3] %vm415, %v411
      %v417 = vld [vmem:[%s267] sm:$0x3]
      %v420 = vcombine.low %v380, %v387
      %v422 = vunpack.c.l.s4 1966171168
      %v423 = vunpack.c.0.s8 %v422
      %v424 = vlaneseq
      %v425 = vshrl.u32 %v424, 7
      %v426 = vsub.s32 %v423, %v425
      %v427 = vrot.slane %v420, %v426
      %v429 = vunpack.c.l.s4 1966171168
      %v430 = vunpack.c.0.s8 %v429
      %v431 = vlaneseq
      %v432 = vshrl.u32 %v431, 7
      %v433 = vsub.s32 %v430, %v432
      %v434 = vrot.slane %v427, %v433
      %v436 = vadd.f32 %v417, %v434
      %437 = vst.msk [vmem:[%s267] sm:$0x3] %vm415, %v436
      %p438 = scmp.lt.s32.totalorder %s20, 1
      %s439 = scalar_select %p438, %s20, 1
      %s440 = smul.addr %s439, 2
      %s441 = scalar_lea.vmem %s3, %s440
      %p442 = scmp.lt.s32.totalorder %s20, 1
      %s443 = scalar_select %p442, %s20, 1
      %s444 = smul.addr %s443, 2
      %s445 = scalar_lea.vmem %s4, %s444
      // Predicated region
      $region37: #{cross_entropy_loss_2d.1} parent=31 // pred_check
        %p446 = pneg %p123
      $region38: #{cross_entropy_loss_2d.1} parent=31 // pred_check_branch
        %448 = sbr.rel (%p446) target = $region40
      $region39: #{cross_entropy_loss_2d.1} parent=31 // pred_region
        _
      $region40: #{cross_entropy_loss_2d.1} parent=31 // pred_fallthru
        _
      // Predicated region
      $region41: #{cross_entropy_loss_2d.1} parent=31 // pred_check
        %p449 = pneg %p149
      $region42: #{cross_entropy_loss_2d.1} parent=31 // pred_check_branch
        %451 = sbr.rel (%p449) target = $region44
      $region43: #{cross_entropy_loss_2d.1} parent=31 // pred_region
        _
      $region44: #{cross_entropy_loss_2d.1} parent=31 // pred_fallthru
        _
    $region32: #{cross_entropy_loss_2d.1} parent=5 // pred_fallthru
      _
    %p452 = scmp.le.s32.totalorder 2, %s11
    // Predicated region
    $region45: #{cross_entropy_loss_2d.1} parent=5 // pred_check
      %p453 = pneg %p452
    $region46: #{cross_entropy_loss_2d.1} parent=5 // pred_check_branch
      %455 = sbr.rel (%p453) target = $region48
    $region47: #{cross_entropy_loss_2d.1} parent=5 // pred_region
      %s456 = ssub.s32 %s11, 2
      // Predicated region
      $region49: #{cross_entropy_loss_2d.1} parent=47 // pred_check
        %p457 = pneg %p129
      $region50: #{cross_entropy_loss_2d.1} parent=47 // pred_check_branch
        %459 = sbr.rel (%p457) target = $region52
      $region51: #{cross_entropy_loss_2d.1} parent=47 // pred_region
        %p460 = scmp.lt.s32.totalorder %s22, 1
        %s461 = scalar_select %p460, %s22, 1
        %s462 = smul.addr %s461, 2
        %s463 = scalar_lea.vmem %s3, %s462
      $region52: #{cross_entropy_loss_2d.1} parent=47 // pred_fallthru
        _
      // Predicated region
      $region53: #{cross_entropy_loss_2d.1} parent=47 // pred_check
        %p464 = pneg %p155
      $region54: #{cross_entropy_loss_2d.1} parent=47 // pred_check_branch
        %466 = sbr.rel (%p464) target = $region56
      $region55: #{cross_entropy_loss_2d.1} parent=47 // pred_region
        %p467 = scmp.lt.s32.totalorder %s22, 1
        %s468 = scalar_select %p467, %s22, 1
        %s469 = smul.addr %s468, 2
        %s470 = scalar_lea.vmem %s4, %s469
      $region56: #{cross_entropy_loss_2d.1} parent=47 // pred_fallthru
        _
    $region48: #{cross_entropy_loss_2d.1} parent=5 // pred_fallthru
      _
  $region6: #{cross_entropy_loss_2d.1} parent=0 // loop_footer
    %s15 = sadd.s32 1, %s11
  $region7: #{cross_entropy_loss_2d.1} parent=0 // loop_footer_branch
    %10 = sbr.rel target = $region3
  $region8: #{cross_entropy_loss_2d.1} parent=0 // loop_exit
    _

</llo_original>
